<compile_context>
chip_gen: v5e
topology: v5e:2x2
jax: 0.10.0
libtpu: 0.0.40
codegen_flags: <defaults>
</compile_context>

<pallas_src>
import jax
import jax.numpy as jnp
from jax.experimental import pallas as pl
from jax.experimental.pallas import tpu as pltpu


def _round_up(v, m):
    return -(-v // m) * m


def _pick_tb(B):
    """Batch-tile size: multiple of 8, as large as the batch supports, but (whenever
    B allows) small enough for >=2 batch tiles so the `parallel` axis can shard
    across v7x's two TensorCores."""
    if B <= 8:
        return 8
    for cand in (1024, 512, 256, 128, 64, 32, 16, 8):
        if B >= 2 * cand:
            return cand
    return max(8, _round_up(-(-B // 2), 8))


def _pick_k_tiling(in_f, TB, CP, NP, budget_bytes):
    """Feature (K) tiling for fc1 so the streamed x / w1 tiles stay inside the VMEM
    budget (v7x only has 64 MiB/TC).  Returns (TK, padded in_f)."""
    if_p = _round_up(in_f, 128)
    fixed = (CP * CP * 4 + CP * NP * 4          # resident w2 / head (bf16, 2 bufs)
             + (2 * CP + NP) * 8                # biases (fp32, 2 bufs)
             + TB * NP * 8                      # out tile (fp32, 2 bufs)
             + TB * CP * 4)                     # fp32 fc1 accumulator
    per_k128 = 128 * 4 * (TB + CP)              # bytes per 128 features: x + w1 tiles
    avail = max(budget_bytes - fixed, per_k128)
    tk_cap = max(128, (avail // per_k128) * 128)
    nk = max(1, -(-if_p // tk_cap))
    tk = _round_up(-(-if_p // nk), 128)
    return tk, nk * tk


def _make_sfd_kernel(n_aux):
    """n_aux = output_size + 1 (number of real aux/softmax columns)."""

    def kernel(x_ref, w1_ref, b1_ref, w2_ref, b2_ref, wh_ref, bh_ref, out_ref, acc_ref):
        k = pl.program_id(1)

        @pl.when(k == 0)
        def _():
            acc_ref[...] = jnp.zeros_like(acc_ref)

        # fc1 partial product for this K slice (bf16 MXU, fp32 accumulation).
        acc_ref[...] += jnp.dot(x_ref[...], w1_ref[...],
                                preferred_element_type=jnp.float32)

        @pl.when(k == pl.num_programs(1) - 1)
        def _():
            # sf_fc1 bias.  nn.LeakyReLU(True) => negative_slope == 1.0 => identity.
            h1 = acc_ref[...] + b1_ref[...]

            # sf_fc4 + Sigmoid (tanh form: one EUP push per element instead of exp+rcp).
            z2 = jnp.dot(h1.astype(jnp.bfloat16), w2_ref[...],
                         preferred_element_type=jnp.float32) + b2_ref[...]
            h2 = 0.5 * jnp.tanh(0.5 * z2) + 0.5

            # Fused adv + aux head: one lane-dense (TB, CP) @ (CP, NP) matmul.
            logits = jnp.dot(h2.astype(jnp.bfloat16), wh_ref[...],
                             preferred_element_type=jnp.float32) + bh_ref[...]

            col = jax.lax.broadcasted_iota(jnp.int32, logits.shape, 1)
            aux_mask = jnp.logical_and(col >= 1, col <= n_aux)

            # Single exp pass:
            #   col 0       -> exp(-logit)        (validity sigmoid)
            #   aux columns -> exp(logit - max)   (softmax numerator)
            #   padded cols -> exp(-huge) == 0
            masked = jnp.where(aux_mask, logits, jnp.float32(-1e30))
            m = jnp.max(masked, axis=-1, keepdims=True)
            t = jnp.where(col == 0, -logits, masked - m)
            et = jnp.exp(t)

            sig = pl.reciprocal(1.0 + et, approx=True)               # used for col 0 only
            denom = jnp.sum(jnp.where(aux_mask, et, 0.0), axis=-1, keepdims=True)
            soft = et / denom                                        # exact: rows sum to 1

            out_ref[...] = jnp.where(col == 0, sig, soft)

    return kernel


def sfd_forward(x, params, *, k_tile=None):
    """x: (B, C, H, W) float32 (NCHW like PyTorch).
    Returns (validity (B, 1), label (B, output_size + 1)), both float32."""
    w1, b1, w2, b2, wadv, badv, waux, baux = params

    B = x.shape[0]
    x_flat = x.reshape(B, -1)
    in_f = x_flat.shape[1]
    c = w1.shape[1]
    n_aux = waux.shape[1]

    # Hidden width: 128 lanes for small c; 256-multiples once c > 128 to fill the
    # 2x256x256 MXU on v6e/v7x (mild bandwidth waste on v5e's 128x128 MXU).
    CP = _round_up(c, 128) if c <= 128 else _round_up(c, 256)
    NP = _round_up(1 + n_aux, 128)     # fused validity + aux head width (lane-dense)

    TB = _pick_tb(B)
    B_pad = _round_up(B, TB)

    VMEM_BUDGET = 32 * 1024 * 1024     # streamed-buffer budget (v7x has 64 MiB/TC total)
    TK, IF_pad = _pick_k_tiling(in_f, TB, CP, NP, VMEM_BUDGET)
    if k_tile is not None:             # explicit override (used by the self-test)
        TK = k_tile
        IF_pad = _round_up(in_f, TK)

    # ---- pack & pad parameters (wrapper-side, traced once under jit) ----
    def pad2(a, rows, cols):
        return jnp.pad(a, ((0, rows - a.shape[0]), (0, cols - a.shape[1])))

    # Cast to bf16 *before* padding: halves the wrapper-side HBM traffic.
    x_pad = jnp.pad(x_flat.astype(jnp.bfloat16),
                    ((0, B_pad - B), (0, IF_pad - in_f)))

    w1p = pad2(w1.astype(jnp.bfloat16), IF_pad, CP)
    b1p = pad2(b1, 1, CP).astype(jnp.float32)
    w2p = pad2(w2.astype(jnp.bfloat16), CP, CP)
    b2p = pad2(b2, 1, CP).astype(jnp.float32)

    whead = jnp.concatenate([wadv, waux], axis=1)        # (c, 1 + n_aux)
    bhead = jnp.concatenate([badv, baux], axis=1)        # (1, 1 + n_aux)
    whp = pad2(whead.astype(jnp.bfloat16), CP, NP)
    bhp = pad2(bhead, 1, NP).astype(jnp.float32)

    grid = (B_pad // TB, IF_pad // TK)

    # VMEM footprint of the pipeline buffers (double-buffered) + scratch; the limit is
    # derived from it rather than hard-coded so it stays inside v7x's 64 MiB/TC.
    footprint = (TB * TK * 4 + TK * CP * 4        # x, w1 tiles (bf16, 2 buffers)
                 + CP * CP * 4 + CP * NP * 4      # w2, fused head (bf16, 2 buffers)
                 + (2 * CP + NP) * 8              # biases (fp32, 2 buffers)
                 + TB * NP * 8                    # out tile (fp32, 2 buffers)
                 + TB * CP * 4)                   # fp32 fc1 accumulator scratch
    vmem_limit = int(min(48 * 1024 * 1024, footprint + 16 * 1024 * 1024))

    fused = pl.pallas_call(
        _make_sfd_kernel(n_aux),
        out_shape=jax.ShapeDtypeStruct((B_pad, NP), jnp.float32),
        grid=grid,
        in_specs=[
            pl.BlockSpec((TB, TK), lambda i, k: (i, k)),   # x: streams over batch & K
            pl.BlockSpec((TK, CP), lambda i, k: (k, 0)),   # w1: streams over K
            pl.BlockSpec((1, CP), lambda i, k: (0, 0)),    # b1 (VMEM-resident)
            pl.BlockSpec((CP, CP), lambda i, k: (0, 0)),   # w2 (VMEM-resident)
            pl.BlockSpec((1, CP), lambda i, k: (0, 0)),    # b2
            pl.BlockSpec((CP, NP), lambda i, k: (0, 0)),   # fused head weight
            pl.BlockSpec((1, NP), lambda i, k: (0, 0)),    # fused head bias
        ],
        out_specs=pl.BlockSpec((TB, NP), lambda i, k: (i, 0)),
        scratch_shapes=[pltpu.VMEM((TB, CP), jnp.float32)],
        compiler_params=pltpu.CompilerParams(
            dimension_semantics=("parallel", "arbitrary"),  # batch shards across TCs
            vmem_limit_bytes=vmem_limit,
        ),
    )(x_pad, w1p, b1p, w2p, b2p, whp, bhp)

    validity = fused[:B, 0:1]
    label = fused[:B, 1:1 + n_aux]
    return validity, label


def sfd_reference(x, params):
    """Pure-JAX fp32 reference matching the PyTorch forward."""
    w1, b1, w2, b2, wadv, badv, waux, baux = params
    xf = x.reshape(x.shape[0], -1).astype(jnp.float32)
    h1 = xf @ w1 + b1                         # LeakyReLU(slope=1.0) == identity
    h2 = jax.nn.sigmoid(h1 @ w2 + b2)
    validity = jax.nn.sigmoid(h2 @ wadv + badv)
    label = jax.nn.softmax(h2 @ waux + baux, axis=-1)
    return validity, label


def init_sfd_params(key, input_size, output_size, c_size):
    """PyTorch nn.Linear default init (uniform +/- 1/sqrt(fan_in)).
    Weights stored transposed: (in_features, out_features)."""
    def linear(key, fan_in, fan_out):
        kw, kb = jax.random.split(key)
        bound = 1.0 / jnp.sqrt(jnp.float32(fan_in))
        w = jax.random.uniform(kw, (fan_in, fan_out), jnp.float32, -bound, bound)
        b = jax.random.uniform(kb, (1, fan_out), jnp.float32, -bound, bound)
        return w, b

    k1, k2, k3, k4 = jax.random.split(key, 4)
    w1, b1 = linear(k1, input_size, c_size)
    w2, b2 = linear(k2, c_size, c_size)
    wadv, badv = linear(k3, c_size, 1)
    waux, baux = linear(k4, c_size, output_size + 1)
    return (w1, b1, w2, b2, wadv, badv, waux, baux)


if __name__ == "__main__":
    key = jax.random.PRNGKey(0)
    kx, kp = jax.random.split(key)

    # Small shapes: batch=2, channels=4, spatial=16x16 -> input_size=1024
    B, C, H, W = 2, 4, 16, 16
    input_size = C * H * W
    c_size = 32
    output_size = 7   # aux head emits output_size + 1 = 8 classes

    x = jax.random.normal(kx, (B, C, H, W), dtype=jnp.float32)
    params = init_sfd_params(kp, input_size, output_size, c_size)

    fwd = jax.jit(sfd_forward, static_argnames=("k_tile",))
    v_ref, l_ref = sfd_reference(x, params)

    # Default path: whole feature dim fits the VMEM budget (single K step).
    validity, label = fwd(x, params)
    jax.block_until_ready((validity, label))
    assert validity.shape == (B, 1)
    assert label.shape == (B, output_size + 1)
    assert bool(jnp.allclose(validity, v_ref, atol=3e-2, rtol=3e-2))
    assert bool(jnp.allclose(label, l_ref, atol=3e-2, rtol=3e-2))
    # exact softmax normalization -> rows sum to 1
    assert bool(jnp.allclose(jnp.sum(label, axis=-1), 1.0, atol=1e-3))

    # Forced K-tiled path (exercises the fc1 fp32 accumulator across K grid steps).
    v2, l2 = fwd(x, params, k_tile=512)
    jax.block_until_ready((v2, l2))
    assert bool(jnp.allclose(v2, v_ref, atol=3e-2, rtol=3e-2))
    assert bool(jnp.allclose(l2, l_ref, atol=3e-2, rtol=3e-2))

    print("KERNEL_OK")
</pallas_src>

<mosaic_0001>
module attributes {stable_mosaic.version = 11 : i64} {
  func.func @kernel(%arg0: i32, %arg1: i32, %arg2: memref<8x1024xbf16, #tpu.memory_space<vmem>>, %arg3: memref<1024x128xbf16, #tpu.memory_space<vmem>>, %arg4: memref<1x128xf32, #tpu.memory_space<vmem>>, %arg5: memref<128x128xbf16, #tpu.memory_space<vmem>>, %arg6: memref<1x128xf32, #tpu.memory_space<vmem>>, %arg7: memref<128x128xbf16, #tpu.memory_space<vmem>>, %arg8: memref<1x128xf32, #tpu.memory_space<vmem>>, %arg9: memref<8x128xf32, #tpu.memory_space<vmem>>, %arg10: memref<8x128xf32, #tpu.memory_space<vmem>>) attributes {dimension_semantics = [#tpu.dimension_semantics<parallel>, #tpu.dimension_semantics<arbitrary>], iteration_bounds = array<i64: 1, 1>, scalar_prefetch = 0 : i64, scratch_operands = 1 : i64, tpu.core_type = #tpu.core_type<tc>, window_params = [{transform_indices = @transform_0, window_bounds = array<i64: 8, 1024>}, {transform_indices = @transform_1, window_bounds = array<i64: 1024, 128>}, {pipeline_mode = #tpu.pipeline_mode<synchronous>, transform_indices = @transform_2, window_bounds = array<i64: 1, 128>}, {pipeline_mode = #tpu.pipeline_mode<synchronous>, transform_indices = @transform_3, window_bounds = array<i64: 128, 128>}, {pipeline_mode = #tpu.pipeline_mode<synchronous>, transform_indices = @transform_4, window_bounds = array<i64: 1, 128>}, {pipeline_mode = #tpu.pipeline_mode<synchronous>, transform_indices = @transform_5, window_bounds = array<i64: 128, 128>}, {pipeline_mode = #tpu.pipeline_mode<synchronous>, transform_indices = @transform_6, window_bounds = array<i64: 1, 128>}, {transform_indices = @transform_7, window_bounds = array<i64: 8, 128>}]} {
    %c0_i32 = arith.constant 0 : i32
    %0 = arith.cmpi eq, %arg1, %c0_i32 : i32
    %1 = arith.extui %0 : i1 to i32
    %c0_i32_0 = arith.constant 0 : i32
    %2 = arith.cmpi ne, %1, %c0_i32_0 : i32
    scf.if %2 {
      %cst_10 = arith.constant 0.000000e+00 : f32
      %12 = vector.broadcast %cst_10 : f32 to vector<8x128xf32>
      %c0_11 = arith.constant 0 : index
      %c0_12 = arith.constant 0 : index
      %13 = vector.load %arg10[%c0_11, %c0_12] : memref<8x128xf32, #tpu.memory_space<vmem>>, vector<8x128xf32>
      tpu.vector_store %arg10[%c0_11, %c0_12], %12 {strides = array<i32>} : memref<8x128xf32, #tpu.memory_space<vmem>>, vector<8x128xf32>,
    } else {
    }
    %c0 = arith.constant 0 : index
    %c0_1 = arith.constant 0 : index
    %3 = vector.load %arg10[%c0, %c0_1] : memref<8x128xf32, #tpu.memory_space<vmem>>, vector<8x128xf32>
    %c0_2 = arith.constant 0 : index
    %c0_3 = arith.constant 0 : index
    %4 = vector.load %arg2[%c0_2, %c0_3] : memref<8x1024xbf16, #tpu.memory_space<vmem>>, vector<8x1024xbf16>
    %c0_4 = arith.constant 0 : index
    %c0_5 = arith.constant 0 : index
    %5 = vector.load %arg3[%c0_4, %c0_5] : memref<1024x128xbf16, #tpu.memory_space<vmem>>, vector<1024x128xbf16>
    %cst = arith.constant dense<0.000000e+00> : vector<8x128xf32>
    %6 = tpu.matmul %4, %5, %cst {dimension_numbers = #tpu.dot_dimension_numbers<[1], [0], [0], [1], [0, 0, 1, 1], [], []>} : vector<8x1024xbf16>, vector<1024x128xbf16>, vector<8x128xf32> -> vector<8x128xf32>
    %7 = arith.addf %3, %6 : vector<8x128xf32>
    %c0_6 = arith.constant 0 : index
    %c0_7 = arith.constant 0 : index
    %8 = vector.load %arg10[%c0_6, %c0_7] : memref<8x128xf32, #tpu.memory_space<vmem>>, vector<8x128xf32>
    tpu.vector_store %arg10[%c0_6, %c0_7], %7 {strides = array<i32>} : memref<8x128xf32, #tpu.memory_space<vmem>>, vector<8x128xf32>,
    %c0_i32_8 = arith.constant 0 : i32
    %9 = arith.cmpi eq, %arg1, %c0_i32_8 : i32
    %10 = arith.extui %9 : i1 to i32
    %c0_i32_9 = arith.constant 0 : i32
    %11 = arith.cmpi ne, %10, %c0_i32_9 : i32
    scf.if %11 {
      %c0_10 = arith.constant 0 : index
      %c0_11 = arith.constant 0 : index
      %12 = vector.load %arg10[%c0_10, %c0_11] : memref<8x128xf32, #tpu.memory_space<vmem>>, vector<8x128xf32>
      %c0_12 = arith.constant 0 : index
      %c0_13 = arith.constant 0 : index
      %13 = vector.load %arg4[%c0_12, %c0_13] : memref<1x128xf32, #tpu.memory_space<vmem>>, vector<1x128xf32>
      %14 = vector.broadcast %13 : vector<1x128xf32> to vector<8x128xf32>
      %15 = arith.addf %12, %14 : vector<8x128xf32>
      %16 = arith.truncf %15 : vector<8x128xf32> to vector<8x128xbf16>
      %c0_14 = arith.constant 0 : index
      %c0_15 = arith.constant 0 : index
      %17 = vector.load %arg5[%c0_14, %c0_15] : memref<128x128xbf16, #tpu.memory_space<vmem>>, vector<128x128xbf16>
      %cst_16 = arith.constant dense<0.000000e+00> : vector<8x128xf32>
      %18 = tpu.matmul %16, %17, %cst_16 {dimension_numbers = #tpu.dot_dimension_numbers<[1], [0], [0], [1], [0, 0, 1, 1], [], []>} : vector<8x128xbf16>, vector<128x128xbf16>, vector<8x128xf32> -> vector<8x128xf32>
      %c0_17 = arith.constant 0 : index
      %c0_18 = arith.constant 0 : index
      %19 = vector.load %arg6[%c0_17, %c0_18] : memref<1x128xf32, #tpu.memory_space<vmem>>, vector<1x128xf32>
      %20 = vector.broadcast %19 : vector<1x128xf32> to vector<8x128xf32>
      %21 = arith.addf %18, %20 : vector<8x128xf32>
      %cst_19 = arith.constant 5.000000e-01 : f32
      %22 = vector.broadcast %cst_19 : f32 to vector<8x128xf32>
      %23 = arith.mulf %22, %21 : vector<8x128xf32>
      %24 = math.tanh %23 : vector<8x128xf32>
      %cst_20 = arith.constant 5.000000e-01 : f32
      %25 = vector.broadcast %cst_20 : f32 to vector<8x128xf32>
      %26 = arith.mulf %25, %24 : vector<8x128xf32>
      %cst_21 = arith.constant 5.000000e-01 : f32
      %27 = vector.broadcast %cst_21 : f32 to vector<8x128xf32>
      %28 = arith.addf %26, %27 : vector<8x128xf32>
      %29 = arith.truncf %28 : vector<8x128xf32> to vector<8x128xbf16>
      %c0_22 = arith.constant 0 : index
      %c0_23 = arith.constant 0 : index
      %30 = vector.load %arg7[%c0_22, %c0_23] : memref<128x128xbf16, #tpu.memory_space<vmem>>, vector<128x128xbf16>
      %cst_24 = arith.constant dense<0.000000e+00> : vector<8x128xf32>
      %31 = tpu.matmul %29, %30, %cst_24 {dimension_numbers = #tpu.dot_dimension_numbers<[1], [0], [0], [1], [0, 0, 1, 1], [], []>} : vector<8x128xbf16>, vector<128x128xbf16>, vector<8x128xf32> -> vector<8x128xf32>
      %c0_25 = arith.constant 0 : index
      %c0_26 = arith.constant 0 : index
      %32 = vector.load %arg8[%c0_25, %c0_26] : memref<1x128xf32, #tpu.memory_space<vmem>>, vector<1x128xf32>
      %33 = vector.broadcast %32 : vector<1x128xf32> to vector<8x128xf32>
      %34 = arith.addf %31, %33 : vector<8x128xf32>
      %35 = tpu.iota {dimensions = array<i32: 1>} : vector<8x128xi32>
      %c1_i32 = arith.constant 1 : i32
      %36 = vector.broadcast %c1_i32 : i32 to vector<8x128xi32>
      %37 = arith.cmpi sge, %35, %36 : vector<8x128xi32>
      %c8_i32 = arith.constant 8 : i32
      %38 = vector.broadcast %c8_i32 : i32 to vector<8x128xi32>
      %39 = arith.cmpi sle, %35, %38 : vector<8x128xi32>
      %40 = arith.andi %37, %39 : vector<8x128xi1>
      %cst_27 = arith.constant -1.000000e+30 : f32
      %41 = vector.broadcast %cst_27 : f32 to vector<8x128xf32>
      %42 = arith.select %40, %34, %41 : vector<8x128xi1>, vector<8x128xf32>
      %cst_28 = arith.constant dense<0xFF800000> : vector<8xf32>
      %43 = vector.multi_reduction <maximumf>, %42, %cst_28 [1] : vector<8x128xf32> to vector<8xf32>
      %44 = vector.shape_cast %43 : vector<8xf32> to vector<8x1xf32>
      %c0_i32_29 = arith.constant 0 : i32
      %45 = vector.broadcast %c0_i32_29 : i32 to vector<8x128xi32>
      %46 = arith.cmpi eq, %35, %45 : vector<8x128xi32>
      %cst_30 = arith.constant 0.000000e+00 : f32
      %47 = vector.broadcast %cst_30 : f32 to vector<8x128xf32>
      %48 = arith.subf %47, %34 : vector<8x128xf32>
      %49 = vector.broadcast %44 : vector<8x1xf32> to vector<8x128xf32>
      %50 = arith.subf %42, %49 : vector<8x128xf32>
      %51 = arith.select %46, %48, %50 : vector<8x128xi1>, vector<8x128xf32>
      %52 = math.exp %51 : vector<8x128xf32>
      %cst_31 = arith.constant 1.000000e+00 : f32
      %53 = vector.broadcast %cst_31 : f32 to vector<8x128xf32>
      %54 = arith.addf %53, %52 : vector<8x128xf32>
      %55 = tpu.reciprocal %54 {approx = true} : vector<8x128xf32> -> vector<8x128xf32>
      %cst_32 = arith.constant 0.000000e+00 : f32
      %56 = vector.broadcast %cst_32 : f32 to vector<8x128xf32>
      %57 = arith.select %40, %52, %56 : vector<8x128xi1>, vector<8x128xf32>
      %cst_33 = arith.constant dense<0.000000e+00> : vector<8xf32>
      %58 = vector.multi_reduction <add>, %57, %cst_33 [1] : vector<8x128xf32> to vector<8xf32>
      %59 = vector.shape_cast %58 : vector<8xf32> to vector<8x1xf32>
      %60 = vector.broadcast %59 : vector<8x1xf32> to vector<8x128xf32>
      %61 = arith.divf %52, %60 : vector<8x128xf32>
      %c0_i32_34 = arith.constant 0 : i32
      %62 = vector.broadcast %c0_i32_34 : i32 to vector<8x128xi32>
      %63 = arith.cmpi eq, %35, %62 : vector<8x128xi32>
      %64 = arith.select %63, %55, %61 : vector<8x128xi1>, vector<8x128xf32>
      %c0_35 = arith.constant 0 : index
      %c0_36 = arith.constant 0 : index
      %65 = vector.load %arg9[%c0_35, %c0_36] : memref<8x128xf32, #tpu.memory_space<vmem>>, vector<8x128xf32>
      tpu.vector_store %arg9[%c0_35, %c0_36], %64 {strides = array<i32>} : memref<8x128xf32, #tpu.memory_space<vmem>>, vector<8x128xf32>,
    } else {
    }
    return
  }
  func.func @transform_0(%arg0: i32, %arg1: i32) -> (i32, i32) {
    %c0_i32 = arith.constant 0 : i32
    return %arg0, %arg1 : i32, i32
  }
  func.func @transform_1(%arg0: i32, %arg1: i32) -> (i32, i32) {
    %c0_i32 = arith.constant 0 : i32
    %c0_i32_0 = arith.constant 0 : i32
    return %arg1, %c0_i32 : i32, i32
  }
  func.func @transform_2(%arg0: i32, %arg1: i32) -> (i32, i32) {
    %c0_i32 = arith.constant 0 : i32
    %c0_i32_0 = arith.constant 0 : i32
    %c0_i32_1 = arith.constant 0 : i32
    return %c0_i32, %c0_i32_0 : i32, i32
  }
  func.func @transform_3(%arg0: i32, %arg1: i32) -> (i32, i32) {
    %c0_i32 = arith.constant 0 : i32
    %c0_i32_0 = arith.constant 0 : i32
    %c0_i32_1 = arith.constant 0 : i32
    return %c0_i32, %c0_i32_0 : i32, i32
  }
  func.func @transform_4(%arg0: i32, %arg1: i32) -> (i32, i32) {
    %c0_i32 = arith.constant 0 : i32
    %c0_i32_0 = arith.constant 0 : i32
    %c0_i32_1 = arith.constant 0 : i32
    return %c0_i32, %c0_i32_0 : i32, i32
  }
  func.func @transform_5(%arg0: i32, %arg1: i32) -> (i32, i32) {
    %c0_i32 = arith.constant 0 : i32
    %c0_i32_0 = arith.constant 0 : i32
    %c0_i32_1 = arith.constant 0 : i32
    return %c0_i32, %c0_i32_0 : i32, i32
  }
  func.func @transform_6(%arg0: i32, %arg1: i32) -> (i32, i32) {
    %c0_i32 = arith.constant 0 : i32
    %c0_i32_0 = arith.constant 0 : i32
    %c0_i32_1 = arith.constant 0 : i32
    return %c0_i32, %c0_i32_0 : i32, i32
  }
  func.func @transform_7(%arg0: i32, %arg1: i32) -> (i32, i32) {
    %c0_i32 = arith.constant 0 : i32
    %c0_i32_0 = arith.constant 0 : i32
    return %arg0, %c0_i32 : i32, i32
  }
}

</mosaic_0001>

<llo_original>
// kernel: sfd_forward.1
$region0: #{sfd_forward.1}
  #allocation0 [shape = 'u32[]', space=smem, size = 0x4, offset = 0x4, fixed_abs, tag = 'smem constant byte address 0x4 - core index']
  #allocation1 [shape = 'u32[72,128]{1,0:T(1,128)}', space=vmem, size = 0x9000, scoped, tag = 'internal scratch']
  #allocation2 [shape = 'f32[8,128]{1,0:T(8,128)}', space=vmem, size = 0x1000, scoped, tag = 'scratch operand']
  %s0 = inlined_call_operand.vmem [shape: bf16[8,1024], index: 0, kind: input, shape index: {}]
  %s1 = inlined_call_operand.vmem [shape: bf16[1024,128], index: 1, kind: input, shape index: {}]
  %s2 = inlined_call_operand.vmem [shape: f32[1,128], index: 2, kind: input, shape index: {}]
  %s3 = inlined_call_operand.vmem [shape: bf16[128,128], index: 3, kind: input, shape index: {}]
  %s4 = inlined_call_operand.vmem [shape: f32[1,128], index: 4, kind: input, shape index: {}]
  %s5 = inlined_call_operand.vmem [shape: bf16[128,128], index: 5, kind: input, shape index: {}]
  %s6 = inlined_call_operand.vmem [shape: f32[1,128], index: 6, kind: input, shape index: {}]
  %s7 = inlined_call_operand.vmem [shape: f32[8,128], index: 7, kind: output, shape index: {}]
  %s8 = sld [smem:[#allocation0]]
  $region46: #{sfd_forward.1} parent=0
    _
  %s10 = ssub.s32 1, %s8
  %s11 = scalar_select 0, %s10, %s8
  // Predicated region
  $region2: #{sfd_forward.1} parent=0 // pred_check
    _
  $region3: #{sfd_forward.1} parent=0 // pred_check_branch
    %13 = sbr.rel (0) target = $region5
  $region4: #{sfd_forward.1} parent=0 // pred_region
    _
  $region5: #{sfd_forward.1} parent=0 // pred_fallthru
    _
  // Predicated region
  $region6: #{sfd_forward.1} parent=0 // pred_check
    _
  $region7: #{sfd_forward.1} parent=0 // pred_check_branch
    %15 = sbr.rel (0) target = $region9
  $region8: #{sfd_forward.1} parent=0 // pred_region
    _
  $region9: #{sfd_forward.1} parent=0 // pred_fallthru
    _
  // Predicated region
  $region10: #{sfd_forward.1} parent=0 // pred_check
    _
  $region11: #{sfd_forward.1} parent=0 // pred_check_branch
    %17 = sbr.rel (0) target = $region13
  $region12: #{sfd_forward.1} parent=0 // pred_region
    _
  $region13: #{sfd_forward.1} parent=0 // pred_fallthru
    _
  // Predicated region
  $region14: #{sfd_forward.1} parent=0 // pred_check
    _
  $region15: #{sfd_forward.1} parent=0 // pred_check_branch
    %19 = sbr.rel (0) target = $region17
  $region16: #{sfd_forward.1} parent=0 // pred_region
    _
  $region17: #{sfd_forward.1} parent=0 // pred_fallthru
    _
  // Predicated region
  $region18: #{sfd_forward.1} parent=0 // pred_check
    _
  $region19: #{sfd_forward.1} parent=0 // pred_check_branch
    %21 = sbr.rel (0) target = $region21
  $region20: #{sfd_forward.1} parent=0 // pred_region
    _
  $region21: #{sfd_forward.1} parent=0 // pred_fallthru
    _
  // Predicated region
  $region22: #{sfd_forward.1} parent=0 // pred_check
    _
  $region23: #{sfd_forward.1} parent=0 // pred_check_branch
    %23 = sbr.rel (0) target = $region25
  $region24: #{sfd_forward.1} parent=0 // pred_region
    _
  $region25: #{sfd_forward.1} parent=0 // pred_fallthru
    _
  // Predicated region
  $region26: #{sfd_forward.1} parent=0 // pred_check
    _
  $region27: #{sfd_forward.1} parent=0 // pred_check_branch
    %25 = sbr.rel (0) target = $region29
  $region28: #{sfd_forward.1} parent=0 // pred_region
    _
  $region29: #{sfd_forward.1} parent=0 // pred_fallthru
    _
  %p26 = scmp.eq.s32.totalorder 0, 0
  // Predicated region
  $region30: #{sfd_forward.1} parent=0 // pred_check
    %p27 = pneg %p26
  $region31: #{sfd_forward.1} parent=0 // pred_check_branch
    %29 = sbr.rel (%p27) target = $region33
  $region32: #{sfd_forward.1} parent=0 // pred_region
    %30 = vst [vmem:[#allocation2] sm:$0xff] 0.0
  $region33: #{sfd_forward.1} parent=0 // pred_fallthru
    _
  %v31 = vld [vmem:[#allocation2] sm:$0xff]
  %v32 = vld [vmem:[%s0] sm:$0xff]
  %v33 = vld [vmem:[%s0 + $0x8] sm:$0xff]
  %v34 = vld [vmem:[%s0 + $0x10] sm:$0xff]
  %v35 = vld [vmem:[%s0 + $0x18] sm:$0xff]
  %v36 = vld [vmem:[%s1] sm:$0xf]
  %v37 = vld [vmem:[%s1 + $0x4] sm:$0xf]
  %v38 = vld [vmem:[%s1 + $0x8] sm:$0xf]
  %v39 = vld [vmem:[%s1 + $0xc] sm:$0xf]
  %v40 = vld [vmem:[%s1 + $0x10] sm:$0xf]
  %v41 = vld [vmem:[%s1 + $0x14] sm:$0xf]
  %v42 = vld [vmem:[%s1 + $0x18] sm:$0xf]
  %v43 = vld [vmem:[%s1 + $0x1c] sm:$0xf]
  %v44 = vld [vmem:[%s1 + $0x20] sm:$0xf]
  %v45 = vld [vmem:[%s1 + $0x24] sm:$0xf]
  %v46 = vld [vmem:[%s1 + $0x28] sm:$0xf]
  %v47 = vld [vmem:[%s1 + $0x2c] sm:$0xf]
  %v48 = vld [vmem:[%s1 + $0x30] sm:$0xf]
  %v49 = vld [vmem:[%s1 + $0x34] sm:$0xf]
  %v50 = vld [vmem:[%s1 + $0x38] sm:$0xf]
  %v51 = vld [vmem:[%s1 + $0x3c] sm:$0xf]
  %v52 = vld [vmem:[%s1 + $0x40] sm:$0xf]
  %v53 = vld [vmem:[%s1 + $0x44] sm:$0xf]
  %v54 = vld [vmem:[%s1 + $0x48] sm:$0xf]
  %v55 = vld [vmem:[%s1 + $0x4c] sm:$0xf]
  %v56 = vld [vmem:[%s1 + $0x50] sm:$0xf]
  %v57 = vld [vmem:[%s1 + $0x54] sm:$0xf]
  %v58 = vld [vmem:[%s1 + $0x58] sm:$0xf]
  %v59 = vld [vmem:[%s1 + $0x5c] sm:$0xf]
  %v60 = vld [vmem:[%s1 + $0x60] sm:$0xf]
  %v61 = vld [vmem:[%s1 + $0x64] sm:$0xf]
  %v62 = vld [vmem:[%s1 + $0x68] sm:$0xf]
  %v63 = vld [vmem:[%s1 + $0x6c] sm:$0xf]
  %v64 = vld [vmem:[%s1 + $0x70] sm:$0xf]
  %v65 = vld [vmem:[%s1 + $0x74] sm:$0xf]
  %v66 = vld [vmem:[%s1 + $0x78] sm:$0xf]
  %v67 = vld [vmem:[%s1 + $0x7c] sm:$0xf]
  %v68 = vld [vmem:[%s1 + $0x80] sm:$0xf]
  %v69 = vld [vmem:[%s1 + $0x84] sm:$0xf]
  %v70 = vld [vmem:[%s1 + $0x88] sm:$0xf]
  %v71 = vld [vmem:[%s1 + $0x8c] sm:$0xf]
  %v72 = vld [vmem:[%s1 + $0x90] sm:$0xf]
  %v73 = vld [vmem:[%s1 + $0x94] sm:$0xf]
  %v74 = vld [vmem:[%s1 + $0x98] sm:$0xf]
  %v75 = vld [vmem:[%s1 + $0x9c] sm:$0xf]
  %v76 = vld [vmem:[%s1 + $0xa0] sm:$0xf]
  %v77 = vld [vmem:[%s1 + $0xa4] sm:$0xf]
  %v78 = vld [vmem:[%s1 + $0xa8] sm:$0xf]
  %v79 = vld [vmem:[%s1 + $0xac] sm:$0xf]
  %v80 = vld [vmem:[%s1 + $0xb0] sm:$0xf]
  %v81 = vld [vmem:[%s1 + $0xb4] sm:$0xf]
  %v82 = vld [vmem:[%s1 + $0xb8] sm:$0xf]
  %v83 = vld [vmem:[%s1 + $0xbc] sm:$0xf]
  %v84 = vld [vmem:[%s1 + $0xc0] sm:$0xf]
  %v85 = vld [vmem:[%s1 + $0xc4] sm:$0xf]
  %v86 = vld [vmem:[%s1 + $0xc8] sm:$0xf]
  %v87 = vld [vmem:[%s1 + $0xcc] sm:$0xf]
  %v88 = vld [vmem:[%s1 + $0xd0] sm:$0xf]
  %v89 = vld [vmem:[%s1 + $0xd4] sm:$0xf]
  %v90 = vld [vmem:[%s1 + $0xd8] sm:$0xf]
  %v91 = vld [vmem:[%s1 + $0xdc] sm:$0xf]
  %v92 = vld [vmem:[%s1 + $0xe0] sm:$0xf]
  %v93 = vld [vmem:[%s1 + $0xe4] sm:$0xf]
  %v94 = vld [vmem:[%s1 + $0xe8] sm:$0xf]
  %v95 = vld [vmem:[%s1 + $0xec] sm:$0xf]
  %v96 = vld [vmem:[%s1 + $0xf0] sm:$0xf]
  %v97 = vld [vmem:[%s1 + $0xf4] sm:$0xf]
  %v98 = vld [vmem:[%s1 + $0xf8] sm:$0xf]
  %v99 = vld [vmem:[%s1 + $0xfc] sm:$0xf]
  %v100 = vld [vmem:[%s1 + $0x100] sm:$0xf]
  %v101 = vld [vmem:[%s1 + $0x104] sm:$0xf]
  %v102 = vld [vmem:[%s1 + $0x108] sm:$0xf]
  %v103 = vld [vmem:[%s1 + $0x10c] sm:$0xf]
  %v104 = vld [vmem:[%s1 + $0x110] sm:$0xf]
  %v105 = vld [vmem:[%s1 + $0x114] sm:$0xf]
  %v106 = vld [vmem:[%s1 + $0x118] sm:$0xf]
  %v107 = vld [vmem:[%s1 + $0x11c] sm:$0xf]
  %v108 = vld [vmem:[%s1 + $0x120] sm:$0xf]
  %v109 = vld [vmem:[%s1 + $0x124] sm:$0xf]
  %v110 = vld [vmem:[%s1 + $0x128] sm:$0xf]
  %v111 = vld [vmem:[%s1 + $0x12c] sm:$0xf]
  %v112 = vld [vmem:[%s1 + $0x130] sm:$0xf]
  %v113 = vld [vmem:[%s1 + $0x134] sm:$0xf]
  %v114 = vld [vmem:[%s1 + $0x138] sm:$0xf]
  %v115 = vld [vmem:[%s1 + $0x13c] sm:$0xf]
  %v116 = vld [vmem:[%s1 + $0x140] sm:$0xf]
  %v117 = vld [vmem:[%s1 + $0x144] sm:$0xf]
  %v118 = vld [vmem:[%s1 + $0x148] sm:$0xf]
  %v119 = vld [vmem:[%s1 + $0x14c] sm:$0xf]
  %v120 = vld [vmem:[%s1 + $0x150] sm:$0xf]
  %v121 = vld [vmem:[%s1 + $0x154] sm:$0xf]
  %v122 = vld [vmem:[%s1 + $0x158] sm:$0xf]
  %v123 = vld [vmem:[%s1 + $0x15c] sm:$0xf]
  %v124 = vld [vmem:[%s1 + $0x160] sm:$0xf]
  %v125 = vld [vmem:[%s1 + $0x164] sm:$0xf]
  %v126 = vld [vmem:[%s1 + $0x168] sm:$0xf]
  %v127 = vld [vmem:[%s1 + $0x16c] sm:$0xf]
  %v128 = vld [vmem:[%s1 + $0x170] sm:$0xf]
  %v129 = vld [vmem:[%s1 + $0x174] sm:$0xf]
  %v130 = vld [vmem:[%s1 + $0x178] sm:$0xf]
  %v131 = vld [vmem:[%s1 + $0x17c] sm:$0xf]
  %v132 = vld [vmem:[%s1 + $0x180] sm:$0xf]
  %v133 = vld [vmem:[%s1 + $0x184] sm:$0xf]
  %v134 = vld [vmem:[%s1 + $0x188] sm:$0xf]
  %v135 = vld [vmem:[%s1 + $0x18c] sm:$0xf]
  %v136 = vld [vmem:[%s1 + $0x190] sm:$0xf]
  %v137 = vld [vmem:[%s1 + $0x194] sm:$0xf]
  %v138 = vld [vmem:[%s1 + $0x198] sm:$0xf]
  %v139 = vld [vmem:[%s1 + $0x19c] sm:$0xf]
  %v140 = vld [vmem:[%s1 + $0x1a0] sm:$0xf]
  %v141 = vld [vmem:[%s1 + $0x1a4] sm:$0xf]
  %v142 = vld [vmem:[%s1 + $0x1a8] sm:$0xf]
  %v143 = vld [vmem:[%s1 + $0x1ac] sm:$0xf]
  %v144 = vld [vmem:[%s1 + $0x1b0] sm:$0xf]
  %v145 = vld [vmem:[%s1 + $0x1b4] sm:$0xf]
  %v146 = vld [vmem:[%s1 + $0x1b8] sm:$0xf]
  %v147 = vld [vmem:[%s1 + $0x1bc] sm:$0xf]
  %v148 = vld [vmem:[%s1 + $0x1c0] sm:$0xf]
  %v149 = vld [vmem:[%s1 + $0x1c4] sm:$0xf]
  %v150 = vld [vmem:[%s1 + $0x1c8] sm:$0xf]
  %v151 = vld [vmem:[%s1 + $0x1cc] sm:$0xf]
  %v152 = vld [vmem:[%s1 + $0x1d0] sm:$0xf]
  %v153 = vld [vmem:[%s1 + $0x1d4] sm:$0xf]
  %v154 = vld [vmem:[%s1 + $0x1d8] sm:$0xf]
  %v155 = vld [vmem:[%s1 + $0x1dc] sm:$0xf]
  %v156 = vld [vmem:[%s1 + $0x1e0] sm:$0xf]
  %v157 = vld [vmem:[%s1 + $0x1e4] sm:$0xf]
  %v158 = vld [vmem:[%s1 + $0x1e8] sm:$0xf]
  %v159 = vld [vmem:[%s1 + $0x1ec] sm:$0xf]
  %v160 = vld [vmem:[%s1 + $0x1f0] sm:$0xf]
  %v161 = vld [vmem:[%s1 + $0x1f4] sm:$0xf]
  %v162 = vld [vmem:[%s1 + $0x1f8] sm:$0xf]
  %v163 = vld [vmem:[%s1 + $0x1fc] sm:$0xf]
  %v168 = vunpack.c.l.b16 %v32
  %v169 = vunpack.c.h.b16 %v32
  %v170 = vunpack.c.l.b16 %v33
  %v171 = vunpack.c.h.b16 %v33
  %v172 = vunpack.c.l.b16 %v34
  %v173 = vunpack.c.h.b16 %v34
  %v174 = vunpack.c.l.b16 %v35
  %v175 = vunpack.c.h.b16 %v35
  %v176 = vpack.c.b16 %v168, %v168
  %v177 = vpack.c.b16 %v169, %v169
  %v178 = vpack.c.b16 %v170, %v170
  %v179 = vpack.c.b16 %v171, %v171
  %v180 = vpack.c.b16 %v172, %v172
  %v181 = vpack.c.b16 %v173, %v173
  %v182 = vpack.c.b16 %v174, %v174
  %v183 = vpack.c.b16 %v175, %v175
  %v320 = vunpack.c.l.b16 %v36
  %v321 = vunpack.c.l.b16 %v37
  %v322 = vunpack.c.l.b16 %v38
  %v323 = vunpack.c.l.b16 %v39
  %v324 = vunpack.c.l.b16 %v40
  %v325 = vunpack.c.l.b16 %v41
  %v326 = vunpack.c.l.b16 %v42
  %v327 = vunpack.c.l.b16 %v43
  %v328 = vunpack.c.l.b16 %v44
  %v329 = vunpack.c.l.b16 %v45
  %v330 = vunpack.c.l.b16 %v46
  %v331 = vunpack.c.l.b16 %v47
  %v332 = vunpack.c.l.b16 %v48
  %v333 = vunpack.c.l.b16 %v49
  %v334 = vunpack.c.l.b16 %v50
  %v335 = vunpack.c.l.b16 %v51
  %v336 = vunpack.c.l.b16 %v52
  %v337 = vunpack.c.l.b16 %v53
  %v338 = vunpack.c.l.b16 %v54
  %v339 = vunpack.c.l.b16 %v55
  %v340 = vunpack.c.l.b16 %v56
  %v341 = vunpack.c.l.b16 %v57
  %v342 = vunpack.c.l.b16 %v58
  %v343 = vunpack.c.l.b16 %v59
  %v344 = vunpack.c.l.b16 %v60
  %v345 = vunpack.c.l.b16 %v61
  %v346 = vunpack.c.l.b16 %v62
  %v347 = vunpack.c.l.b16 %v63
  %v348 = vunpack.c.l.b16 %v64
  %v349 = vunpack.c.l.b16 %v65
  %v350 = vunpack.c.l.b16 %v66
  %v351 = vunpack.c.l.b16 %v67
  %v352 = vunpack.c.l.b16 %v68
  %v353 = vunpack.c.l.b16 %v69
  %v354 = vunpack.c.l.b16 %v70
  %v355 = vunpack.c.l.b16 %v71
  %v356 = vunpack.c.l.b16 %v72
  %v357 = vunpack.c.l.b16 %v73
  %v358 = vunpack.c.l.b16 %v74
  %v359 = vunpack.c.l.b16 %v75
  %v360 = vunpack.c.l.b16 %v76
  %v361 = vunpack.c.l.b16 %v77
  %v362 = vunpack.c.l.b16 %v78
  %v363 = vunpack.c.l.b16 %v79
  %v364 = vunpack.c.l.b16 %v80
  %v365 = vunpack.c.l.b16 %v81
  %v366 = vunpack.c.l.b16 %v82
  %v367 = vunpack.c.l.b16 %v83
  %v368 = vunpack.c.l.b16 %v84
  %v369 = vunpack.c.l.b16 %v85
  %v370 = vunpack.c.l.b16 %v86
  %v371 = vunpack.c.l.b16 %v87
  %v372 = vunpack.c.l.b16 %v88
  %v373 = vunpack.c.l.b16 %v89
  %v374 = vunpack.c.l.b16 %v90
  %v375 = vunpack.c.l.b16 %v91
  %v376 = vunpack.c.l.b16 %v92
  %v377 = vunpack.c.l.b16 %v93
  %v378 = vunpack.c.l.b16 %v94
  %v379 = vunpack.c.l.b16 %v95
  %v380 = vunpack.c.l.b16 %v96
  %v381 = vunpack.c.l.b16 %v97
  %v382 = vunpack.c.l.b16 %v98
  %v383 = vunpack.c.l.b16 %v99
  %v384 = vunpack.c.l.b16 %v100
  %v385 = vunpack.c.l.b16 %v101
  %v386 = vunpack.c.l.b16 %v102
  %v387 = vunpack.c.l.b16 %v103
  %v388 = vunpack.c.l.b16 %v104
  %v389 = vunpack.c.l.b16 %v105
  %v390 = vunpack.c.l.b16 %v106
  %v391 = vunpack.c.l.b16 %v107
  %v392 = vunpack.c.l.b16 %v108
  %v393 = vunpack.c.l.b16 %v109
  %v394 = vunpack.c.l.b16 %v110
  %v395 = vunpack.c.l.b16 %v111
  %v396 = vunpack.c.l.b16 %v112
  %v397 = vunpack.c.l.b16 %v113
  %v398 = vunpack.c.l.b16 %v114
  %v399 = vunpack.c.l.b16 %v115
  %v400 = vunpack.c.l.b16 %v116
  %v401 = vunpack.c.l.b16 %v117
  %v402 = vunpack.c.l.b16 %v118
  %v403 = vunpack.c.l.b16 %v119
  %v404 = vunpack.c.l.b16 %v120
  %v405 = vunpack.c.l.b16 %v121
  %v406 = vunpack.c.l.b16 %v122
  %v407 = vunpack.c.l.b16 %v123
  %v408 = vunpack.c.l.b16 %v124
  %v409 = vunpack.c.l.b16 %v125
  %v410 = vunpack.c.l.b16 %v126
  %v411 = vunpack.c.l.b16 %v127
  %v412 = vunpack.c.l.b16 %v128
  %v413 = vunpack.c.l.b16 %v129
  %v414 = vunpack.c.l.b16 %v130
  %v415 = vunpack.c.l.b16 %v131
  %v416 = vunpack.c.l.b16 %v132
  %v417 = vunpack.c.l.b16 %v133
  %v418 = vunpack.c.l.b16 %v134
  %v419 = vunpack.c.l.b16 %v135
  %v420 = vunpack.c.l.b16 %v136
  %v421 = vunpack.c.l.b16 %v137
  %v422 = vunpack.c.l.b16 %v138
  %v423 = vunpack.c.l.b16 %v139
  %v424 = vunpack.c.l.b16 %v140
  %v425 = vunpack.c.l.b16 %v141
  %v426 = vunpack.c.l.b16 %v142
  %v427 = vunpack.c.l.b16 %v143
  %v428 = vunpack.c.l.b16 %v144
  %v429 = vunpack.c.l.b16 %v145
  %v430 = vunpack.c.l.b16 %v146
  %v431 = vunpack.c.l.b16 %v147
  %v432 = vunpack.c.l.b16 %v148
  %v433 = vunpack.c.l.b16 %v149
  %v434 = vunpack.c.l.b16 %v150
  %v435 = vunpack.c.l.b16 %v151
  %v436 = vunpack.c.l.b16 %v152
  %v437 = vunpack.c.l.b16 %v153
  %v438 = vunpack.c.l.b16 %v154
  %v439 = vunpack.c.l.b16 %v155
  %v440 = vunpack.c.l.b16 %v156
  %v441 = vunpack.c.l.b16 %v157
  %v442 = vunpack.c.l.b16 %v158
  %v443 = vunpack.c.l.b16 %v159
  %v444 = vunpack.c.l.b16 %v160
  %v445 = vunpack.c.l.b16 %v161
  %v446 = vunpack.c.l.b16 %v162
  %v447 = vunpack.c.l.b16 %v163
  %v448 = vpack.c.b16 %v321, %v320
  %v449 = vpack.c.b16 %v323, %v322
  %v450 = vpack.c.b16 %v325, %v324
  %v451 = vpack.c.b16 %v327, %v326
  %v452 = vpack.c.b16 %v329, %v328
  %v453 = vpack.c.b16 %v331, %v330
  %v454 = vpack.c.b16 %v333, %v332
  %v455 = vpack.c.b16 %v335, %v334
  %v456 = vpack.c.b16 %v337, %v336
  %v457 = vpack.c.b16 %v339, %v338
  %v458 = vpack.c.b16 %v341, %v340
  %v459 = vpack.c.b16 %v343, %v342
  %v460 = vpack.c.b16 %v345, %v344
  %v461 = vpack.c.b16 %v347, %v346
  %v462 = vpack.c.b16 %v349, %v348
  %v463 = vpack.c.b16 %v351, %v350
  %v464 = vpack.c.b16 %v353, %v352
  %v465 = vpack.c.b16 %v355, %v354
  %v466 = vpack.c.b16 %v357, %v356
  %v467 = vpack.c.b16 %v359, %v358
  %v468 = vpack.c.b16 %v361, %v360
  %v469 = vpack.c.b16 %v363, %v362
  %v470 = vpack.c.b16 %v365, %v364
  %v471 = vpack.c.b16 %v367, %v366
  %v472 = vpack.c.b16 %v369, %v368
  %v473 = vpack.c.b16 %v371, %v370
  %v474 = vpack.c.b16 %v373, %v372
  %v475 = vpack.c.b16 %v375, %v374
  %v476 = vpack.c.b16 %v377, %v376
  %v477 = vpack.c.b16 %v379, %v378
  %v478 = vpack.c.b16 %v381, %v380
  %v479 = vpack.c.b16 %v383, %v382
  %v480 = vpack.c.b16 %v385, %v384
  %v481 = vpack.c.b16 %v387, %v386
  %v482 = vpack.c.b16 %v389, %v388
  %v483 = vpack.c.b16 %v391, %v390
  %v484 = vpack.c.b16 %v393, %v392
  %v485 = vpack.c.b16 %v395, %v394
  %v486 = vpack.c.b16 %v397, %v396
  %v487 = vpack.c.b16 %v399, %v398
  %v488 = vpack.c.b16 %v401, %v400
  %v489 = vpack.c.b16 %v403, %v402
  %v490 = vpack.c.b16 %v405, %v404
  %v491 = vpack.c.b16 %v407, %v406
  %v492 = vpack.c.b16 %v409, %v408
  %v493 = vpack.c.b16 %v411, %v410
  %v494 = vpack.c.b16 %v413, %v412
  %v495 = vpack.c.b16 %v415, %v414
  %v496 = vpack.c.b16 %v417, %v416
  %v497 = vpack.c.b16 %v419, %v418
  %v498 = vpack.c.b16 %v421, %v420
  %v499 = vpack.c.b16 %v423, %v422
  %v500 = vpack.c.b16 %v425, %v424
  %v501 = vpack.c.b16 %v427, %v426
  %v502 = vpack.c.b16 %v429, %v428
  %v503 = vpack.c.b16 %v431, %v430
  %v504 = vpack.c.b16 %v433, %v432
  %v505 = vpack.c.b16 %v435, %v434
  %v506 = vpack.c.b16 %v437, %v436
  %v507 = vpack.c.b16 %v439, %v438
  %v508 = vpack.c.b16 %v441, %v440
  %v509 = vpack.c.b16 %v443, %v442
  %v510 = vpack.c.b16 %v445, %v444
  %v511 = vpack.c.b16 %v447, %v446
  %576 = vmatpush.bf16.msra.mxu0 %v455
  %577 = vmatpush.bf16.msra.mxu0 %v454
  %578 = vmatpush.bf16.msra.mxu0 %v453
  %579 = vmatpush.bf16.msra.mxu0 %v452
  %580 = vmatpush.bf16.msra.mxu0 %v451
  %581 = vmatpush.bf16.msra.mxu0 %v450
  %582 = vmatpush.bf16.msra.mxu0 %v449
  %583 = vmatpush.bf16.msra.mxu0 %v448
  %584 = vmatmul.bf16.gmra.mxu0 %v176
  %v585 = vpop.f32.mrf.mxu0
  %v586 = vadd.f32 0.0, %v585
  %v587 = vpop.f32.mrf.mxu0
  %588 = vdwg.mxu0
  %589 = vmatpush.bf16.msra.mxu0 %v463
  %590 = vmatpush.bf16.msra.mxu0 %v462
  %591 = vmatpush.bf16.msra.mxu0 %v461
  %592 = vmatpush.bf16.msra.mxu0 %v460
  %593 = vmatpush.bf16.msra.mxu0 %v459
  %594 = vmatpush.bf16.msra.mxu0 %v458
  %595 = vmatpush.bf16.msra.mxu0 %v457
  %596 = vmatpush.bf16.msra.mxu0 %v456
  %597 = vmatmul.bf16.gmra.mxu0 %v177
  %v598 = vpop.f32.mrf.mxu0
  %v599 = vadd.f32 %v586, %v598
  %v600 = vpop.f32.mrf.mxu0
  %601 = vdwg.mxu0
  %602 = vmatpush.bf16.msra.mxu0 %v471
  %603 = vmatpush.bf16.msra.mxu0 %v470
  %604 = vmatpush.bf16.msra.mxu0 %v469
  %605 = vmatpush.bf16.msra.mxu0 %v468
  %606 = vmatpush.bf16.msra.mxu0 %v467
  %607 = vmatpush.bf16.msra.mxu0 %v466
  %608 = vmatpush.bf16.msra.mxu0 %v465
  %609 = vmatpush.bf16.msra.mxu0 %v464
  %610 = vmatmul.bf16.gmra.mxu0 %v178
  %v611 = vpop.f32.mrf.mxu0
  %v612 = vadd.f32 %v599, %v611
  %v613 = vpop.f32.mrf.mxu0
  %614 = vdwg.mxu0
  %615 = vmatpush.bf16.msra.mxu0 %v479
  %616 = vmatpush.bf16.msra.mxu0 %v478
  %617 = vmatpush.bf16.msra.mxu0 %v477
  %618 = vmatpush.bf16.msra.mxu0 %v476
  %619 = vmatpush.bf16.msra.mxu0 %v475
  %620 = vmatpush.bf16.msra.mxu0 %v474
  %621 = vmatpush.bf16.msra.mxu0 %v473
  %622 = vmatpush.bf16.msra.mxu0 %v472
  %623 = vmatmul.bf16.gmra.mxu0 %v179
  %v624 = vpop.f32.mrf.mxu0
  %v625 = vadd.f32 %v612, %v624
  %v626 = vpop.f32.mrf.mxu0
  %627 = vdwg.mxu0
  %628 = vmatpush.bf16.msra.mxu0 %v487
  %629 = vmatpush.bf16.msra.mxu0 %v486
  %630 = vmatpush.bf16.msra.mxu0 %v485
  %631 = vmatpush.bf16.msra.mxu0 %v484
  %632 = vmatpush.bf16.msra.mxu0 %v483
  %633 = vmatpush.bf16.msra.mxu0 %v482
  %634 = vmatpush.bf16.msra.mxu0 %v481
  %635 = vmatpush.bf16.msra.mxu0 %v480
  %636 = vmatmul.bf16.gmra.mxu0 %v180
  %v637 = vpop.f32.mrf.mxu0
  %v638 = vadd.f32 %v625, %v637
  %v639 = vpop.f32.mrf.mxu0
  %640 = vdwg.mxu0
  %641 = vmatpush.bf16.msra.mxu0 %v495
  %642 = vmatpush.bf16.msra.mxu0 %v494
  %643 = vmatpush.bf16.msra.mxu0 %v493
  %644 = vmatpush.bf16.msra.mxu0 %v492
  %645 = vmatpush.bf16.msra.mxu0 %v491
  %646 = vmatpush.bf16.msra.mxu0 %v490
  %647 = vmatpush.bf16.msra.mxu0 %v489
  %648 = vmatpush.bf16.msra.mxu0 %v488
  %649 = vmatmul.bf16.gmra.mxu0 %v181
  %v650 = vpop.f32.mrf.mxu0
  %v651 = vadd.f32 %v638, %v650
  %v652 = vpop.f32.mrf.mxu0
  %653 = vdwg.mxu0
  %654 = vmatpush.bf16.msra.mxu0 %v503
  %655 = vmatpush.bf16.msra.mxu0 %v502
  %656 = vmatpush.bf16.msra.mxu0 %v501
  %657 = vmatpush.bf16.msra.mxu0 %v500
  %658 = vmatpush.bf16.msra.mxu0 %v499
  %659 = vmatpush.bf16.msra.mxu0 %v498
  %660 = vmatpush.bf16.msra.mxu0 %v497
  %661 = vmatpush.bf16.msra.mxu0 %v496
  %662 = vmatmul.bf16.gmra.mxu0 %v182
  %v663 = vpop.f32.mrf.mxu0
  %v664 = vadd.f32 %v651, %v663
  %v665 = vpop.f32.mrf.mxu0
  %666 = vdwg.mxu0
  %667 = vmatpush.bf16.msra.mxu0 %v511
  %668 = vmatpush.bf16.msra.mxu0 %v510
  %669 = vmatpush.bf16.msra.mxu0 %v509
  %670 = vmatpush.bf16.msra.mxu0 %v508
  %671 = vmatpush.bf16.msra.mxu0 %v507
  %672 = vmatpush.bf16.msra.mxu0 %v506
  %673 = vmatpush.bf16.msra.mxu0 %v505
  %674 = vmatpush.bf16.msra.mxu0 %v504
  %675 = vmatmul.bf16.gmra.mxu0 %v183
  %v676 = vpop.f32.mrf.mxu0
  %v677 = vadd.f32 %v664, %v676
  %v678 = vpop.f32.mrf.mxu0
  %679 = vdwg.mxu0
  %v680 = vadd.f32 %v31, %v677
  %681 = vst [vmem:[#allocation2] sm:$0xff] %v680
  // Predicated region
  $region34: #{sfd_forward.1} parent=0 // pred_check
    %p682 = pneg %p26
  $region35: #{sfd_forward.1} parent=0 // pred_check_branch
    %684 = sbr.rel (%p682) target = $region37
  $region36: #{sfd_forward.1} parent=0 // pred_region
    %v685 = vld [vmem:[#allocation2] sm:$0xff]
    %v686 = vld [vmem:[%s2] sm:$0x1]
    %v688 = vperm.slane %v686, 0
    %v690 = vadd.f32 %v685, %v688
    %v691 = vpack.c.bf16 %v690, %v690
    %v692 = vld [vmem:[%s3] sm:$0xf]
    %v693 = vld [vmem:[%s3 + $0x4] sm:$0xf]
    %v694 = vld [vmem:[%s3 + $0x8] sm:$0xf]
    %v695 = vld [vmem:[%s3 + $0xc] sm:$0xf]
    %v696 = vld [vmem:[%s3 + $0x10] sm:$0xf]
    %v697 = vld [vmem:[%s3 + $0x14] sm:$0xf]
    %v698 = vld [vmem:[%s3 + $0x18] sm:$0xf]
    %v699 = vld [vmem:[%s3 + $0x1c] sm:$0xf]
    %v700 = vld [vmem:[%s3 + $0x20] sm:$0xf]
    %v701 = vld [vmem:[%s3 + $0x24] sm:$0xf]
    %v702 = vld [vmem:[%s3 + $0x28] sm:$0xf]
    %v703 = vld [vmem:[%s3 + $0x2c] sm:$0xf]
    %v704 = vld [vmem:[%s3 + $0x30] sm:$0xf]
    %v705 = vld [vmem:[%s3 + $0x34] sm:$0xf]
    %v706 = vld [vmem:[%s3 + $0x38] sm:$0xf]
    %v707 = vld [vmem:[%s3 + $0x3c] sm:$0xf]
    %v708 = vld [vmem:[%s4] sm:$0x1]
    %v710 = vperm.slane %v708, 0
    %v728 = vunpack.c.l.b16 %v692
    %v729 = vunpack.c.l.b16 %v693
    %v730 = vunpack.c.l.b16 %v694
    %v731 = vunpack.c.l.b16 %v695
    %v732 = vunpack.c.l.b16 %v696
    %v733 = vunpack.c.l.b16 %v697
    %v734 = vunpack.c.l.b16 %v698
    %v735 = vunpack.c.l.b16 %v699
    %v736 = vunpack.c.l.b16 %v700
    %v737 = vunpack.c.l.b16 %v701
    %v738 = vunpack.c.l.b16 %v702
    %v739 = vunpack.c.l.b16 %v703
    %v740 = vunpack.c.l.b16 %v704
    %v741 = vunpack.c.l.b16 %v705
    %v742 = vunpack.c.l.b16 %v706
    %v743 = vunpack.c.l.b16 %v707
    %v744 = vpack.c.b16 %v729, %v728
    %v745 = vpack.c.b16 %v731, %v730
    %v746 = vpack.c.b16 %v733, %v732
    %v747 = vpack.c.b16 %v735, %v734
    %v748 = vpack.c.b16 %v737, %v736
    %v749 = vpack.c.b16 %v739, %v738
    %v750 = vpack.c.b16 %v741, %v740
    %v751 = vpack.c.b16 %v743, %v742
    %760 = vmatpush.bf16.msra.mxu0 %v751
    %761 = vmatpush.bf16.msra.mxu0 %v750
    %762 = vmatpush.bf16.msra.mxu0 %v749
    %763 = vmatpush.bf16.msra.mxu0 %v748
    %764 = vmatpush.bf16.msra.mxu0 %v747
    %765 = vmatpush.bf16.msra.mxu0 %v746
    %766 = vmatpush.bf16.msra.mxu0 %v745
    %767 = vmatpush.bf16.msra.mxu0 %v744
    %768 = vmatmul.bf16.gmra.mxu0 %v691
    %v769 = vpop.f32.mrf.mxu0
    %v770 = vadd.f32 %v710, %v769
    %v771 = vpop.f32.mrf.mxu0
    %772 = vdwg.mxu0
    %v773 = vmul.f32 %v770, 0.5
    %v774 = vtanh.pop %v773
    %v775 = vmul.f32 %v774, 0.5
    %v776 = vadd.f32 %v775, 0.5
    %v777 = vpack.c.bf16 %v776, %v776
    %v778 = vld [vmem:[%s5] sm:$0xf]
    %v779 = vld [vmem:[%s5 + $0x4] sm:$0xf]
    %v780 = vld [vmem:[%s5 + $0x8] sm:$0xf]
    %v781 = vld [vmem:[%s5 + $0xc] sm:$0xf]
    %v782 = vld [vmem:[%s5 + $0x10] sm:$0xf]
    %v783 = vld [vmem:[%s5 + $0x14] sm:$0xf]
    %v784 = vld [vmem:[%s5 + $0x18] sm:$0xf]
    %v785 = vld [vmem:[%s5 + $0x1c] sm:$0xf]
    %v786 = vld [vmem:[%s5 + $0x20] sm:$0xf]
    %v787 = vld [vmem:[%s5 + $0x24] sm:$0xf]
    %v788 = vld [vmem:[%s5 + $0x28] sm:$0xf]
    %v789 = vld [vmem:[%s5 + $0x2c] sm:$0xf]
    %v790 = vld [vmem:[%s5 + $0x30] sm:$0xf]
    %v791 = vld [vmem:[%s5 + $0x34] sm:$0xf]
    %v792 = vld [vmem:[%s5 + $0x38] sm:$0xf]
    %v793 = vld [vmem:[%s5 + $0x3c] sm:$0xf]
    %v794 = vld [vmem:[%s6] sm:$0x1]
    %v796 = vperm.slane %v794, 0
    %v814 = vunpack.c.l.b16 %v778
    %v815 = vunpack.c.l.b16 %v779
    %v816 = vunpack.c.l.b16 %v780
    %v817 = vunpack.c.l.b16 %v781
    %v818 = vunpack.c.l.b16 %v782
    %v819 = vunpack.c.l.b16 %v783
    %v820 = vunpack.c.l.b16 %v784
    %v821 = vunpack.c.l.b16 %v785
    %v822 = vunpack.c.l.b16 %v786
    %v823 = vunpack.c.l.b16 %v787
    %v824 = vunpack.c.l.b16 %v788
    %v825 = vunpack.c.l.b16 %v789
    %v826 = vunpack.c.l.b16 %v790
    %v827 = vunpack.c.l.b16 %v791
    %v828 = vunpack.c.l.b16 %v792
    %v829 = vunpack.c.l.b16 %v793
    %v830 = vpack.c.b16 %v815, %v814
    %v831 = vpack.c.b16 %v817, %v816
    %v832 = vpack.c.b16 %v819, %v818
    %v833 = vpack.c.b16 %v821, %v820
    %v834 = vpack.c.b16 %v823, %v822
    %v835 = vpack.c.b16 %v825, %v824
    %v836 = vpack.c.b16 %v827, %v826
    %v837 = vpack.c.b16 %v829, %v828
    %846 = vmatpush.bf16.msra.mxu0 %v837
    %847 = vmatpush.bf16.msra.mxu0 %v836
    %848 = vmatpush.bf16.msra.mxu0 %v835
    %849 = vmatpush.bf16.msra.mxu0 %v834
    %850 = vmatpush.bf16.msra.mxu0 %v833
    %851 = vmatpush.bf16.msra.mxu0 %v832
    %852 = vmatpush.bf16.msra.mxu0 %v831
    %853 = vmatpush.bf16.msra.mxu0 %v830
    %854 = vmatmul.bf16.gmra.mxu0 %v777
    %v855 = vpop.f32.mrf.mxu0
    %v856 = vadd.f32 %v796, %v855
    %v857 = vpop.f32.mrf.mxu0
    %858 = vdwg.mxu0
    %v859 = vlaneseq
    %v860 = vand.u32 %v859, 127
    %vm861 = vcmp.ge.s32.totalorder %v860, 1
    %vm862 = vcmp.le.s32.totalorder %v860, 8
    %vm863 = vmand %vm861, %vm862
    %v864 = vsel %vm863, %v856, -1e+30
    %865 = vmax.xlane.f32.xlu0 %v864
    %v866 = vpop.xlane.xlu0 %865
    %vm867 = vcmp.eq.s32.totalorder %v860, 0
    %v868 = vsub.f32 0.0, %v856
    %v869 = vsub.f32 %v864, %v866
    %v870 = vsel %vm867, %v868, %v869
    %v871 = vmul.f32 %v870, 1.442695
    %v872 = vpow.pop %v871
    %v873 = vadd.f32 %v872, 1.0
    %v874 = vrcp.pop %v873
    %v875 = vsel %vm863, %v872, 0.0
    %876 = vadd.xlane.f32.xlu0 %v875
    %v877 = vpop.xlane.xlu0 %876
    %v878 = vrcp.pop %v877
    %v879 = vmul.f32 %v877, %v878
    %v880 = vsub.f32 1.0, %v879
    %v881 = vmul.f32 %v878, %v880
    %v882 = vadd.f32 %v878, %v881
    %vm883 = vweird.f32 %v877
    %vm884 = vweird.f32 %v878
    %vm885 = vmor %vm883, %vm884
    %v886 = vsel %vm885, %v878, %v882
    %v887 = vand.u32 2147483647, %v877
    %vm888 = vcmp.eq.f32.partialorder %v887, 8.507059e+37
    %v889 = vand.u32 %v877, 2147483648
    %v890 = vor.u32 1.1754944e-38, %v889
    %v891 = vsel %vm888, %v890, %v886
    %v892 = vmul.f32 %v872, %v891
    %v893 = vsel %vm867, %v874, %v892
    %894 = vst [vmem:[%s7] sm:$0xff] %v893
  $region37: #{sfd_forward.1} parent=0 // pred_fallthru
    _
  // Predicated region
  $region38: #{sfd_forward.1} parent=0 // pred_check
    _
  $region39: #{sfd_forward.1} parent=0 // pred_check_branch
    %896 = sbr.rel (0) target = $region41
  $region40: #{sfd_forward.1} parent=0 // pred_region
    _
  $region41: #{sfd_forward.1} parent=0 // pred_fallthru
    _
  // Predicated region
  $region42: #{sfd_forward.1} parent=0 // pred_check
    _
  $region43: #{sfd_forward.1} parent=0 // pred_check_branch
    %898 = sbr.rel (0) target = $region45
  $region44: #{sfd_forward.1} parent=0 // pred_region
    _
  $region45: #{sfd_forward.1} parent=0 // pred_fallthru
    _

</llo_original>
